<compile_context>
chip_gen: v7x
topology: tpu7x:2x2x1
jax: 0.10.0
libtpu: 0.0.40
codegen_flags: <defaults>
</compile_context>

<pallas_src>
import jax
import jax.numpy as jnp
from jax.experimental import pallas as pl
from jax.experimental.pallas import tpu as pltpu


def _predict_kernel(x_ref, w1t_ref, b1_ref, w2_ref, b2_ref, o_ref):
    # x_ref:   (TB, D)  x's dtype (f32 or bf16)
    # w1t_ref: (8, D)   same dtype as x (PyTorch-native (out, in) layout)
    # b1_ref:  (1, 8)   f32
    # w2_ref:  (1, 8)   f32 (PyTorch-native (out, in) layout)
    # b2_ref:  (1, 1)   f32
    # o_ref:   (1, TB)  f32, lane-dense along batch
    x = x_ref[...]

    # Layer 1: h[b, j] = sum_d x[b, d] * W1[j, d]   -> (TB, 8), f32 accumulate.
    h = jax.lax.dot_general(
        x, w1t_ref[...],
        dimension_numbers=(((1,), (1,)), ((), ())),
        preferred_element_type=jnp.float32,
    )
    h = jnp.maximum(h + b1_ref[...], 0.0)          # bias + ReLU (VPU, f32)

    # Dropout(p=0) == identity -> omitted.

    # Layer 2, emitted transposed so the store is lane-dense along batch:
    # out_t[0, b] = sum_j W2[0, j] * h[b, j]        -> (1, TB)
    out_t = jax.lax.dot_general(
        w2_ref[...], h,
        dimension_numbers=(((1,), (1,)), ((), ())),
        preferred_element_type=jnp.float32,
    )
    o_ref[...] = (out_t + b2_ref[...]).astype(o_ref.dtype)


def predict_layer(x, w1t, b1, w2, b2, *, batch_tile=None,
                  vmem_limit_bytes=48 * 1024 * 1024):
    """x: (..., D) float32/bfloat16.  Weights in PyTorch layout:
    w1t: (8, D), b1: (1, 8), w2: (1, 8), b2: (1, 1).  Returns (..., 1) f32."""
    *lead, D = x.shape
    x2d = x.reshape(-1, D)
    B = x2d.shape[0]
    H = w1t.shape[0]      # 8
    orig_B = B

    # Layer-1 matmul runs in x's dtype; epilogue params stay f32.
    w1t = w1t.astype(x2d.dtype)
    b1 = b1.astype(jnp.float32).reshape(1, H)
    w2 = w2.astype(jnp.float32).reshape(1, H)
    b2 = b2.astype(jnp.float32).reshape(1, 1)

    itemsize = jnp.dtype(x2d.dtype).itemsize
    if batch_tile is None:
        # ~16 MiB budget for the double-buffered x tile; keep the tile a
        # lane-dense multiple of 128 rows (fits v5e/v6e/v7x VMEM budgets).
        budget = 16 * 1024 * 1024
        tb = budget // (2 * max(D, 1) * itemsize)
        batch_tile = max(128, min(1024, (tb // 128) * 128))

    if B <= batch_tile:
        # Whole batch in one grid step: no pipeline / per-step overhead.
        B_pad = max(8, ((B + 7) // 8) * 8)
        batch_tile = B_pad
    else:
        assert batch_tile % 128 == 0, "multi-tile path needs 128-aligned tiles"
        B_pad = ((B + batch_tile - 1) // batch_tile) * batch_tile

    if B_pad != B:
        x2d = jnp.pad(x2d, ((0, B_pad - B), (0, 0)))

    num_tiles = B_pad // batch_tile

    out_row = pl.pallas_call(
        _predict_kernel,
        out_shape=jax.ShapeDtypeStruct((1, B_pad), jnp.float32),
        grid_spec=pltpu.PrefetchScalarGridSpec(
            num_scalar_prefetch=0,
            grid=(num_tiles,),
            in_specs=[
                pl.BlockSpec((batch_tile, D), lambda i: (i, 0)),   # x tile
                pl.BlockSpec((H, D), lambda i: (0, 0)),            # W1 (8, D), lane-dense
                pl.BlockSpec((1, H), lambda i: (0, 0)),            # b1
                pl.BlockSpec((1, H), lambda i: (0, 0)),            # W2 row
                pl.BlockSpec((1, 1), lambda i: (0, 0)),            # b2
            ],
            out_specs=pl.BlockSpec((1, batch_tile), lambda i: (0, i)),
        ),
        compiler_params=pltpu.CompilerParams(
            dimension_semantics=("parallel",),   # batch axis shards across TCs on v7x
            vmem_limit_bytes=vmem_limit_bytes,
        ),
    )(x2d, w1t, b1, w2, b2)

    # Lane-dense (1, B_pad) row -> (B, 1) column, drop padding rows.
    out = out_row.reshape(B_pad, 1)[:orig_B]
    return out.reshape(*lead, 1)


def init_params(key, embedding_dim, hidden=8, out=1):
    """PyTorch nn.Linear default init, stored in PyTorch-native layouts."""
    k1, k2, k3, k4 = jax.random.split(key, 4)
    bound1 = 1.0 / jnp.sqrt(jnp.float32(embedding_dim))
    bound2 = 1.0 / jnp.sqrt(jnp.float32(hidden))
    w1t = jax.random.uniform(k1, (hidden, embedding_dim), jnp.float32, -bound1, bound1)
    b1 = jax.random.uniform(k2, (1, hidden), jnp.float32, -bound1, bound1)
    w2 = jax.random.uniform(k3, (out, hidden), jnp.float32, -bound2, bound2)
    b2 = jax.random.uniform(k4, (out, 1), jnp.float32, -bound2, bound2)
    return w1t, b1, w2, b2


def _reference(x, w1t, b1, w2, b2):
    xf = x.astype(jnp.float32).reshape(-1, x.shape[-1])
    h = jnp.maximum(xf @ w1t.T.astype(jnp.float32) + b1.reshape(1, -1), 0.0)
    out = h @ w2.reshape(1, -1).T + b2.reshape(1, 1)
    return out.reshape(*x.shape[:-1], 1)


if __name__ == "__main__":
    key = jax.random.PRNGKey(0)
    kx, kp, kx2 = jax.random.split(key, 3)

    # Small case: single-tile fast path (whole batch in one invocation).
    batch, embedding_dim = 8, 32
    x = jax.random.normal(kx, (batch, embedding_dim), dtype=jnp.float32)
    w1t, b1, w2, b2 = init_params(kp, embedding_dim)
    out = jax.block_until_ready(predict_layer(x, w1t, b1, w2, b2))
    ref = _reference(x, w1t, b1, w2, b2)
    assert out.shape == (batch, 1)
    assert jnp.allclose(out, ref, atol=1e-5, rtol=1e-5), "mismatch (small case)"

    # Ragged batch: multi-tile path with padding + lane-dense 128-row tiles.
    batch2, dim2 = 300, 256
    x2 = jax.random.normal(kx2, (batch2, dim2), dtype=jnp.float32)
    w1t2, b12, w22, b22 = init_params(kp, dim2)
    out2 = jax.block_until_ready(
        predict_layer(x2, w1t2, b12, w22, b22, batch_tile=128))
    ref2 = _reference(x2, w1t2, b12, w22, b22)
    assert out2.shape == (batch2, 1)
    assert jnp.allclose(out2, ref2, atol=1e-4, rtol=1e-4), "mismatch (multi-tile)"

    print("KERNEL_OK")
</pallas_src>

<mosaic_0001>
module attributes {stable_mosaic.version = 11 : i64} {
  func.func @_predict_kernel(%arg0: i32, %arg1: memref<8x32xf32, #tpu.memory_space<vmem>>, %arg2: memref<8x32xf32, #tpu.memory_space<vmem>>, %arg3: memref<1x8xf32, #tpu.memory_space<vmem>>, %arg4: memref<1x8xf32, #tpu.memory_space<vmem>>, %arg5: memref<1x1xf32, #tpu.memory_space<vmem>>, %arg6: memref<1x8xf32, #tpu.memory_space<vmem>>) attributes {dimension_semantics = [#tpu.dimension_semantics<parallel>], iteration_bounds = array<i64: 1>, scalar_prefetch = 0 : i64, scratch_operands = 0 : i64, tpu.core_type = #tpu.core_type<tc>, window_params = [{transform_indices = @transform_0, window_bounds = array<i64: 8, 32>}, {pipeline_mode = #tpu.pipeline_mode<synchronous>, transform_indices = @transform_1, window_bounds = array<i64: 8, 32>}, {pipeline_mode = #tpu.pipeline_mode<synchronous>, transform_indices = @transform_2, window_bounds = array<i64: 1, 8>}, {pipeline_mode = #tpu.pipeline_mode<synchronous>, transform_indices = @transform_3, window_bounds = array<i64: 1, 8>}, {pipeline_mode = #tpu.pipeline_mode<synchronous>, transform_indices = @transform_4, window_bounds = array<i64: 1, 1>}, {transform_indices = @transform_5, window_bounds = array<i64: 1, 8>}]} {
    %c0 = arith.constant 0 : index
    %c0_0 = arith.constant 0 : index
    %0 = vector.load %arg1[%c0, %c0_0] : memref<8x32xf32, #tpu.memory_space<vmem>>, vector<8x32xf32>
    %c0_1 = arith.constant 0 : index
    %c0_2 = arith.constant 0 : index
    %1 = vector.load %arg2[%c0_1, %c0_2] : memref<8x32xf32, #tpu.memory_space<vmem>>, vector<8x32xf32>
    %cst = arith.constant dense<0.000000e+00> : vector<8x8xf32>
    %2 = tpu.matmul %0, %1, %cst {dimension_numbers = #tpu.dot_dimension_numbers<[1], [1], [0], [0], [0, 0, 1, 0], [], []>} : vector<8x32xf32>, vector<8x32xf32>, vector<8x8xf32> -> vector<8x8xf32>
    %c0_3 = arith.constant 0 : index
    %c0_4 = arith.constant 0 : index
    %3 = vector.load %arg3[%c0_3, %c0_4] : memref<1x8xf32, #tpu.memory_space<vmem>>, vector<1x8xf32>
    %4 = vector.broadcast %3 : vector<1x8xf32> to vector<8x8xf32>
    %5 = arith.addf %2, %4 : vector<8x8xf32>
    %cst_5 = arith.constant 0.000000e+00 : f32
    %6 = vector.broadcast %cst_5 : f32 to vector<8x8xf32>
    %7 = arith.maximumf %5, %6 : vector<8x8xf32>
    %c0_6 = arith.constant 0 : index
    %c0_7 = arith.constant 0 : index
    %8 = vector.load %arg4[%c0_6, %c0_7] : memref<1x8xf32, #tpu.memory_space<vmem>>, vector<1x8xf32>
    %cst_8 = arith.constant dense<0.000000e+00> : vector<1x8xf32>
    %9 = tpu.matmul %8, %7, %cst_8 {dimension_numbers = #tpu.dot_dimension_numbers<[1], [1], [0], [0], [0, 0, 1, 0], [], []>} : vector<1x8xf32>, vector<8x8xf32>, vector<1x8xf32> -> vector<1x8xf32>
    %c0_9 = arith.constant 0 : index
    %c0_10 = arith.constant 0 : index
    %10 = vector.load %arg5[%c0_9, %c0_10] : memref<1x1xf32, #tpu.memory_space<vmem>>, vector<1x1xf32>
    %11 = vector.broadcast %10 : vector<1x1xf32> to vector<1x8xf32>
    %12 = arith.addf %9, %11 : vector<1x8xf32>
    %c0_11 = arith.constant 0 : index
    %c0_12 = arith.constant 0 : index
    %13 = vector.load %arg6[%c0_11, %c0_12] : memref<1x8xf32, #tpu.memory_space<vmem>>, vector<1x8xf32>
    tpu.vector_store %arg6[%c0_11, %c0_12], %12 {strides = array<i32>} : memref<1x8xf32, #tpu.memory_space<vmem>>, vector<1x8xf32>,
    return
  }
  func.func @transform_0(%arg0: i32) -> (i32, i32) {
    %c0_i32 = arith.constant 0 : i32
    %c0_i32_0 = arith.constant 0 : i32
    return %arg0, %c0_i32 : i32, i32
  }
  func.func @transform_1(%arg0: i32) -> (i32, i32) {
    %c0_i32 = arith.constant 0 : i32
    %c0_i32_0 = arith.constant 0 : i32
    %c0_i32_1 = arith.constant 0 : i32
    return %c0_i32, %c0_i32_0 : i32, i32
  }
  func.func @transform_2(%arg0: i32) -> (i32, i32) {
    %c0_i32 = arith.constant 0 : i32
    %c0_i32_0 = arith.constant 0 : i32
    %c0_i32_1 = arith.constant 0 : i32
    return %c0_i32, %c0_i32_0 : i32, i32
  }
  func.func @transform_3(%arg0: i32) -> (i32, i32) {
    %c0_i32 = arith.constant 0 : i32
    %c0_i32_0 = arith.constant 0 : i32
    %c0_i32_1 = arith.constant 0 : i32
    return %c0_i32, %c0_i32_0 : i32, i32
  }
  func.func @transform_4(%arg0: i32) -> (i32, i32) {
    %c0_i32 = arith.constant 0 : i32
    %c0_i32_0 = arith.constant 0 : i32
    %c0_i32_1 = arith.constant 0 : i32
    return %c0_i32, %c0_i32_0 : i32, i32
  }
  func.func @transform_5(%arg0: i32) -> (i32, i32) {
    %c0_i32 = arith.constant 0 : i32
    %c0_i32_0 = arith.constant 0 : i32
    return %c0_i32, %arg0 : i32, i32
  }
}

</mosaic_0001>

<llo_original>
// kernel: tpu_custom_call.1
$region0: #{tpu_custom_call.1}
  #allocation0 [shape = 'u32[]', space=smem, size = 0x4, offset = 0x4, fixed_abs, tag = 'smem constant byte address 0x4 - core index']
  #allocation1 [shape = 'u32[144,128]{1,0:T(1,128)}', space=vmem, size = 0x12000, scoped, tag = 'internal scratch']
  #allocation2 [shape = 'f32[1,1]{1,0:T(1,128)S(1)}', space=vmem, size = 0x200, scoped, tag = 'scoped memory for tpu_custom_call.1']
  %s0 = inlined_call_operand.hbm [shape: f32[8,32], index: 0, kind: input, shape index: {}]
  %s1 = inlined_call_operand.hbm [shape: f32[8,32], index: 1, kind: input, shape index: {}]
  %s2 = inlined_call_operand.vmem [shape: f32[1,8], index: 2, kind: input, shape index: {}]
  %s3 = inlined_call_operand.vmem [shape: f32[1,8], index: 3, kind: input, shape index: {}]
  %s4 = inlined_call_operand.<no memory space> [shape: f32[1,1], index: 4, kind: input, shape index: {}]
  %s5 = inlined_call_operand.hbm [shape: f32[1,8], index: 5, kind: output, shape index: {}]
  %s6 = sld [smem:[#allocation0]]
  $region38: #{tpu_custom_call.1} parent=0
    _
  %s8 = ssub.s32 1, %s6
  %s9 = scalar_select 0, %s8, %s6
  %v10 = vstv %s4
  %11 = vst [vmem:[#allocation2] sm:$0x1] %v10
  $region1: #{tpu_custom_call.1} parent=0
    #allocation3 [shape = 'u8[4096]{0}', space=vmem, size = 0x1000, scoped, tag = 'input window, operand 0, single buffered']
    #allocation4 [shape = 's32[1]{0}', space=sflag, size = 0x4, scoped, tag = 'scoped memory for tpu_custom_call.1']
    #allocation5 [shape = 's32[1]{0}', space=sflag, size = 0x4, scoped, tag = 'scoped memory for tpu_custom_call.1']
    #allocation6 [shape = 'u8[4096]{0}', space=vmem, size = 0x1000, scoped, tag = 'input window, operand 1, single buffered']
    #allocation7 [shape = 's32[1]{0}', space=sflag, size = 0x4, scoped, tag = 'scoped memory for tpu_custom_call.1']
    #allocation8 [shape = 'u8[512]{0}', space=vmem, size = 0x400, scoped, tag = 'output window, operand 0, single buffered']
    %12 = vsyncpa [#allocation4], 0
    %13 = vsyncpa [#allocation7], 0
    %14 = vsyncpa [#allocation5], 0
    // Predicated region
    $region2: #{tpu_custom_call.1} parent=1 // pred_check
      _
    $region3: #{tpu_custom_call.1} parent=1 // pred_check_branch
      %16 = sbr.rel (0) target = $region5
    $region4: #{tpu_custom_call.1} parent=1 // pred_region
      %s18 = ssub.s32 128, 128
      %19 = vsyncadd [#allocation4], %s18
      %s21 = sshll.u32 [#allocation3], 4
      %s22 = int_to_ptr.vmem [resolvable:$true] %s21
      %24 = dma.hbm_to_vmem [thread:$0]  %s0, 128, %s22, [#allocation4]
    $region5: #{tpu_custom_call.1} parent=1 // pred_fallthru
      _
    // Predicated region
    $region6: #{tpu_custom_call.1} parent=1 // pred_check
      _
    $region7: #{tpu_custom_call.1} parent=1 // pred_check_branch
      %26 = sbr.rel (0) target = $region9
    $region8: #{tpu_custom_call.1} parent=1 // pred_region
      %s28 = ssub.s32 128, 128
      %29 = vsyncadd [#allocation7], %s28
      %s31 = sshll.u32 [#allocation6], 4
      %s32 = int_to_ptr.vmem [resolvable:$true] %s31
      %34 = dma.hbm_to_vmem [thread:$0]  %s1, 128, %s32, [#allocation7]
    $region9: #{tpu_custom_call.1} parent=1 // pred_fallthru
      _
    // Predicated region
    $region10: #{tpu_custom_call.1} parent=1 // pred_check
      _
    $region11: #{tpu_custom_call.1} parent=1 // pred_check_branch
      %36 = sbr.rel (0) target = $region13
    $region12: #{tpu_custom_call.1} parent=1 // pred_region
      _
    $region13: #{tpu_custom_call.1} parent=1 // pred_fallthru
      _
    // Predicated region
    $region14: #{tpu_custom_call.1} parent=1 // pred_check
      _
    $region15: #{tpu_custom_call.1} parent=1 // pred_check_branch
      %38 = sbr.rel (0) target = $region17
    $region16: #{tpu_custom_call.1} parent=1 // pred_region
      _
    $region17: #{tpu_custom_call.1} parent=1 // pred_fallthru
      _
    // Predicated region
    $region18: #{tpu_custom_call.1} parent=1 // pred_check
      _
    $region19: #{tpu_custom_call.1} parent=1 // pred_check_branch
      %40 = sbr.rel (0) target = $region21
    $region20: #{tpu_custom_call.1} parent=1 // pred_region
      _
    $region21: #{tpu_custom_call.1} parent=1 // pred_fallthru
      _
    // Predicated region
    $region22: #{tpu_custom_call.1} parent=1 // pred_check
      _
    $region23: #{tpu_custom_call.1} parent=1 // pred_check_branch
      %42 = sbr.rel (0) target = $region25
    $region24: #{tpu_custom_call.1} parent=1 // pred_region
      %43 = dma.done [#allocation4], 128
    $region25: #{tpu_custom_call.1} parent=1 // pred_fallthru
      _
    // Predicated region
    $region26: #{tpu_custom_call.1} parent=1 // pred_check
      _
    $region27: #{tpu_custom_call.1} parent=1 // pred_check_branch
      %45 = sbr.rel (0) target = $region29
    $region28: #{tpu_custom_call.1} parent=1 // pred_region
      %46 = dma.done [#allocation7], 128
    $region29: #{tpu_custom_call.1} parent=1 // pred_fallthru
      _
    %v47 = vld [vmem:[#allocation3] sm:$0xff]
    %v48 = vld [vmem:[#allocation6] sm:$0xff]
    %v49 = vld [vmem:[%s2] sm:$0x1]
    %v51 = vlaneseq
    %v52 = vshrl.u32 %v51, 7
    %v53 = vsub.s32 0, %v52
    %v54 = vrot.slane %v49, %v53
    %vm56 = vcmask 261120
    %v58 = vsel %vm56, %v47, 0
    %v61 = vsel %vm56, %v48, 0
    %63 = vmatprep.subr.mxu0 0.0
    %64 = vmatpush1.xpose.msra.mxu0 %v61
    %65 = vmatprep.subr.mxu0 0.0
    %66 = vmatpush1.xpose.msra.mxu0 0.0
    %67 = vmatprep.subr.mxu0 0.0
    %68 = vmatpush1.xpose.msra.mxu0 0.0
    %69 = vmatprep.subr.mxu0 0.0
    %70 = vmatpush1.xpose.msra.mxu0 0.0
    %71 = vmatprep.subr.mxu0 0.0
    %72 = vmatpush1.xpose.msra.mxu0 0.0
    %73 = vmatprep.subr.mxu0 0.0
    %74 = vmatpush1.xpose.msra.mxu0 0.0
    %75 = vmatprep.subr.mxu0 0.0
    %76 = vmatpush1.xpose.msra.mxu0 0.0
    %77 = vmatprep.subr.mxu0 0.0
    %78 = vmatpush1.xpose.msra.mxu0 0.0
    %79 = vmatprep.subr.mxu0 0.0
    %80 = vmatpush1.xpose.msra.mxu0 0.0
    %81 = vmatprep.subr.mxu0 0.0
    %82 = vmatpush1.xpose.msra.mxu0 0.0
    %83 = vmatprep.subr.mxu0 0.0
    %84 = vmatpush1.xpose.msra.mxu0 0.0
    %85 = vmatprep.subr.mxu0 0.0
    %86 = vmatpush1.xpose.msra.mxu0 0.0
    %87 = vmatprep.subr.mxu0 0.0
    %88 = vmatpush1.xpose.msra.mxu0 0.0
    %89 = vmatprep.subr.mxu0 0.0
    %90 = vmatpush1.xpose.msra.mxu0 0.0
    %91 = vmatprep.subr.mxu0 0.0
    %92 = vmatpush1.xpose.msra.mxu0 0.0
    %93 = vmatprep.subr.mxu0 0.0
    %94 = vmatpush1.xpose.msra.mxu0 0.0
    %95 = vmatprep.subr.mxu0 0.0
    %96 = vmatpush1.xpose.msra.mxu0 0.0
    %97 = vmatprep.subr.mxu0 0.0
    %98 = vmatpush1.xpose.msra.mxu0 0.0
    %99 = vmatprep.subr.mxu0 0.0
    %100 = vmatpush1.xpose.msra.mxu0 0.0
    %101 = vmatprep.subr.mxu0 0.0
    %102 = vmatpush1.xpose.msra.mxu0 0.0
    %103 = vmatprep.subr.mxu0 0.0
    %104 = vmatpush1.xpose.msra.mxu0 0.0
    %105 = vmatprep.subr.mxu0 0.0
    %106 = vmatpush1.xpose.msra.mxu0 0.0
    %107 = vmatprep.subr.mxu0 0.0
    %108 = vmatpush1.xpose.msra.mxu0 0.0
    %109 = vmatprep.subr.mxu0 0.0
    %110 = vmatpush1.xpose.msra.mxu0 0.0
    %111 = vmatprep.subr.mxu0 0.0
    %112 = vmatpush1.xpose.msra.mxu0 0.0
    %113 = vmatprep.subr.mxu0 0.0
    %114 = vmatpush1.xpose.msra.mxu0 0.0
    %115 = vmatprep.subr.mxu0 0.0
    %116 = vmatpush1.xpose.msra.mxu0 0.0
    %117 = vmatprep.subr.mxu0 0.0
    %118 = vmatpush1.xpose.msra.mxu0 0.0
    %119 = vmatprep.subr.mxu0 0.0
    %120 = vmatpush1.xpose.msra.mxu0 0.0
    %121 = vmatprep.subr.mxu0 0.0
    %122 = vmatpush1.xpose.msra.mxu0 0.0
    %123 = vmatprep.subr.mxu0 0.0
    %124 = vmatpush1.xpose.msra.mxu0 0.0
    %125 = vmatprep.subr.mxu0 0.0
    %126 = vmatpush1.xpose.msra.mxu0 0.0
    %127 = vmatprep.mubr.f32.mxu0 0.0
    %128 = vmatmul.mubr.f32.gmra.mrb[0].mxu0 %v58
    %v129 = vpop.f32.mrb[0].mxu0
    %v130 = vadd.f32 %v54, %v129
    %v131 = vpop.f32.mrb[0].mxu0
    %132 = vdwg.mxu0
    %v133 = vmax.f32 %v130, 0.0
    %v134 = vld [vmem:[%s3] sm:$0x1]
    %v135 = vld [vmem:[#allocation2] sm:$0x1]
    %137 = vset.pattern.permute.xlu0 0
    %138 = vperm.xlu0 %137, %v135
    %v139 = vpop.permute.xlu0 %138
    %v141 = vlaneseq
    %v142 = vshrl.u32 %v141, 7
    %v143 = vsub.s32 0, %v142
    %v144 = vrot.slane %v139, %v143
    %vm145 = vcmask 64512
    %v147 = vsel %vm145, %v134, 0
    %v150 = vsel %vm145, %v133, 0
    %152 = vmatprep.subr.mxu0 0.0
    %153 = vmatpush1.xpose.msra.mxu0 %v150
    %154 = vmatprep.subr.mxu0 0.0
    %155 = vmatpush1.xpose.msra.mxu0 0.0
    %156 = vmatprep.subr.mxu0 0.0
    %157 = vmatpush1.xpose.msra.mxu0 0.0
    %158 = vmatprep.subr.mxu0 0.0
    %159 = vmatpush1.xpose.msra.mxu0 0.0
    %160 = vmatprep.subr.mxu0 0.0
    %161 = vmatpush1.xpose.msra.mxu0 0.0
    %162 = vmatprep.subr.mxu0 0.0
    %163 = vmatpush1.xpose.msra.mxu0 0.0
    %164 = vmatprep.subr.mxu0 0.0
    %165 = vmatpush1.xpose.msra.mxu0 0.0
    %166 = vmatprep.subr.mxu0 0.0
    %167 = vmatpush1.xpose.msra.mxu0 0.0
    %168 = vmatprep.subr.mxu0 0.0
    %169 = vmatpush1.xpose.msra.mxu0 0.0
    %170 = vmatprep.subr.mxu0 0.0
    %171 = vmatpush1.xpose.msra.mxu0 0.0
    %172 = vmatprep.subr.mxu0 0.0
    %173 = vmatpush1.xpose.msra.mxu0 0.0
    %174 = vmatprep.subr.mxu0 0.0
    %175 = vmatpush1.xpose.msra.mxu0 0.0
    %176 = vmatprep.subr.mxu0 0.0
    %177 = vmatpush1.xpose.msra.mxu0 0.0
    %178 = vmatprep.subr.mxu0 0.0
    %179 = vmatpush1.xpose.msra.mxu0 0.0
    %180 = vmatprep.subr.mxu0 0.0
    %181 = vmatpush1.xpose.msra.mxu0 0.0
    %182 = vmatprep.subr.mxu0 0.0
    %183 = vmatpush1.xpose.msra.mxu0 0.0
    %184 = vmatprep.subr.mxu0 0.0
    %185 = vmatpush1.xpose.msra.mxu0 0.0
    %186 = vmatprep.subr.mxu0 0.0
    %187 = vmatpush1.xpose.msra.mxu0 0.0
    %188 = vmatprep.subr.mxu0 0.0
    %189 = vmatpush1.xpose.msra.mxu0 0.0
    %190 = vmatprep.subr.mxu0 0.0
    %191 = vmatpush1.xpose.msra.mxu0 0.0
    %192 = vmatprep.subr.mxu0 0.0
    %193 = vmatpush1.xpose.msra.mxu0 0.0
    %194 = vmatprep.subr.mxu0 0.0
    %195 = vmatpush1.xpose.msra.mxu0 0.0
    %196 = vmatprep.subr.mxu0 0.0
    %197 = vmatpush1.xpose.msra.mxu0 0.0
    %198 = vmatprep.subr.mxu0 0.0
    %199 = vmatpush1.xpose.msra.mxu0 0.0
    %200 = vmatprep.subr.mxu0 0.0
    %201 = vmatpush1.xpose.msra.mxu0 0.0
    %202 = vmatprep.subr.mxu0 0.0
    %203 = vmatpush1.xpose.msra.mxu0 0.0
    %204 = vmatprep.subr.mxu0 0.0
    %205 = vmatpush1.xpose.msra.mxu0 0.0
    %206 = vmatprep.subr.mxu0 0.0
    %207 = vmatpush1.xpose.msra.mxu0 0.0
    %208 = vmatprep.subr.mxu0 0.0
    %209 = vmatpush1.xpose.msra.mxu0 0.0
    %210 = vmatprep.subr.mxu0 0.0
    %211 = vmatpush1.xpose.msra.mxu0 0.0
    %212 = vmatprep.subr.mxu0 0.0
    %213 = vmatpush1.xpose.msra.mxu0 0.0
    %214 = vmatprep.subr.mxu0 0.0
    %215 = vmatpush1.xpose.msra.mxu0 0.0
    %216 = vmatprep.mubr.f32.mxu0 0.0
    %217 = vmatmul.mubr.f32.gmra.mrb[0].mxu0 %v147
    %v218 = vpop.f32.mrb[0].mxu0
    %v219 = vadd.f32 %v144, %v218
    %v220 = vpop.f32.mrb[0].mxu0
    %221 = vdwg.mxu0
    %vm222 = vcmask 57344
    %223 = vst.msk [vmem:[#allocation8] sm:$0x1] %vm222, %v219
    // Predicated region
    $region30: #{tpu_custom_call.1} parent=1 // pred_check
      _
    $region31: #{tpu_custom_call.1} parent=1 // pred_check_branch
      %225 = sbr.rel (0) target = $region33
    $region32: #{tpu_custom_call.1} parent=1 // pred_region
      %s227 = ssub.s32 16, 16
      %228 = vsyncadd [#allocation5], %s227
      %s230 = sshll.u32 [#allocation8], 4
      %s231 = int_to_ptr.vmem [resolvable:$true] %s230
      %233 = dma.vmem_to_hbm [thread:$0]  %s231, 16, %s5, [#allocation5]
    $region33: #{tpu_custom_call.1} parent=1 // pred_fallthru
      _
    // Predicated region
    $region34: #{tpu_custom_call.1} parent=1 // pred_check
      _
    $region35: #{tpu_custom_call.1} parent=1 // pred_check_branch
      %235 = sbr.rel (0) target = $region37
    $region36: #{tpu_custom_call.1} parent=1 // pred_region
      %236 = dma.done [#allocation5], 16
    $region37: #{tpu_custom_call.1} parent=1 // pred_fallthru
      _
    %237 = vsyncpa [#allocation4], 1
    %238 = vsyncpa [#allocation7], 1
    %239 = vsyncpa [#allocation5], 1

</llo_original>
